<compile_context>
chip_gen: v5e
topology: v5e:2x2
jax: 0.10.0
libtpu: 0.0.40
codegen_flags: <defaults>
</compile_context>

<pallas_src>
import jax
import jax.numpy as jnp
import numpy as np
from jax import lax
from jax.experimental import pallas as pl
from jax.experimental.pallas import tpu as pltpu

# ---- Small, EEGNet-consistent configuration --------------------------------
B = 2                       # batch
H, W0 = 4, 39               # inp_dim = [electrodes, time samples]
C0, C1, C2 = 8, 16, 16      # chns
G0, G1 = 4, 8               # groups
P0, P1 = 2, 2               # pooling
K = 8                       # k_size (temporal kernel width)
NC = 2                      # classes_num
W1 = W0 - K + 1             # 32  after block-1 temporal conv
T2 = W1 // P0               # 16  after block-2 avg pool
T3 = T2 // P1               # 8   after block-3 avg pool
DIM = C2 * T3               # 128 flattened feature dim
DIM2 = DIM // 2             # 64
EPS = 1e-5                  # BatchNorm eps

KPAD = 160                  # H*W0 = 156 padded up to a sublane-tile multiple
NCPAD = 128                 # classes padded to one full lane tile


# ---------------------------------------------------------------------------
# Single fused kernel: whole (padded) batch, 3 MXU matmuls + 2 ELUs + softmax
# ---------------------------------------------------------------------------
def eegnet_kernel(x_ref, t_ref, bc_ref, m34_ref, b3_ref, wh_ref, bh_ref,
                  out_ref):
    x = x_ref[...]                                                     # (Bp, KPAD) f32
    # blocks 1+2 (conv1 + BN1 + grouped conv2 + BN2) folded into one matrix
    y = jnp.dot(x.astype(jnp.bfloat16), t_ref[...],
                preferred_element_type=jnp.float32) + bc_ref[...]      # (Bp, 512)
    y = jnp.where(y > 0, y, jnp.exp(jnp.minimum(y, 0.0)) - 1.0)        # ELU (f32)
    # AvgPool(1,P0) + grouped 1x1 conv + 1x1 conv + BN3 folded into one matrix
    z = jnp.dot(y.astype(jnp.bfloat16), m34_ref[...],
                preferred_element_type=jnp.float32) + b3_ref[...]      # (Bp, 256)
    z = jnp.where(z > 0, z, jnp.exp(jnp.minimum(z, 0.0)) - 1.0)        # ELU (f32)
    # AvgPool(1,P1) + flatten + Linear(out1) + Linear(out2) folded into one
    # lane-padded head matrix (padded lanes have zero weight & bias -> 0).
    logits = jnp.dot(z.astype(jnp.bfloat16), wh_ref[...],
                     preferred_element_type=jnp.float32) + bh_ref[...]  # (Bp, 128)
    # softmax over the NC real lanes only (masked), padded lanes -> prob 0
    lane = lax.broadcasted_iota(jnp.int32, logits.shape, 1)
    valid = lane < NC
    m = jnp.max(jnp.where(valid, logits, -jnp.inf), axis=-1, keepdims=True)
    e = jnp.where(valid, jnp.exp(logits - m), 0.0)
    denom = jnp.sum(e, axis=-1, keepdims=True)
    probs = e * pl.reciprocal(denom, approx=True)
    # one lane-dense packed output: [logits_pad | probs_pad]
    out_ref[:, :NCPAD] = logits
    out_ref[:, NCPAD:] = probs
    # TODO(synk): nn.Dropout is identity here (inference mode, no RNG mask).


# ---------------------------------------------------------------------------
# Wrapper: one pallas_call, whole padded batch in a single grid step
# ---------------------------------------------------------------------------
def _full(a):
    return pl.BlockSpec(a.shape, lambda i: (0, 0))


def eegnet_forward(x, p):
    bsz = x.shape[0]
    bpad = ((bsz + 7) // 8) * 8                       # clean f32 sublane layout
    x_flat = x.reshape(bsz, H * W0)                   # layout glue only
    x_pad = jnp.zeros((bpad, KPAD), jnp.float32).at[:bsz, :H * W0].set(x_flat)
    ops = (p['T_big'], p['bc_big'], p['M34'], p['b3_big'],
           p['W_head'], p['b_head'])
    packed = pl.pallas_call(
        eegnet_kernel,
        out_shape=jax.ShapeDtypeStruct((bpad, 2 * NCPAD), jnp.float32),
        grid=(1,),
        in_specs=[pl.BlockSpec((bpad, KPAD), lambda i: (0, 0))]
                 + [_full(o) for o in ops],
        out_specs=pl.BlockSpec((bpad, 2 * NCPAD), lambda i: (0, 0)),
        compiler_params=pltpu.CompilerParams(dimension_semantics=("arbitrary",)),
    )(x_pad, *ops)
    logits = packed[:bsz, :NC]
    probs = packed[:bsz, NCPAD:NCPAD + NC]
    return probs, logits


# ---------------------------------------------------------------------------
# Host-side exact folding of the linear segments (weights only, done once)
# ---------------------------------------------------------------------------
def _pool_mat(n_in, pool):
    n_out = n_in // pool
    m = np.zeros((n_in, n_out), np.float32)
    for i in range(n_out):
        m[i * pool:(i + 1) * pool, i] = 1.0 / pool
    return m


def fold_params(p):
    w1 = np.asarray(p['w1_conv'])[:, 0, 0, :]            # (C0, K)
    w2 = np.asarray(p['w2_conv'])                         # (C1, C0//G0, H, 1)
    w3a = np.asarray(p['w3a_conv'])                       # (C1, C1//G1, 1, 1)
    w3b = np.asarray(p['w3b_conv'])[:, :, 0, 0]           # (C2, C1)
    s1, t1 = np.asarray(p['s1']), np.asarray(p['t1'])
    s2, t2 = np.asarray(p['s2']), np.asarray(p['t2'])
    s3, t3 = np.asarray(p['s3']), np.asarray(p['t3'])
    wl1, bl1 = np.asarray(p['wl1']), np.asarray(p['bl1'])
    wl2, bl2 = np.asarray(p['wl2']), np.asarray(p['bl2'])

    # dense (zero-padded) grouped conv weights
    w2d = np.zeros((H, C1, C0), np.float32)                # [h, co, c0]
    opg, ipg = C1 // G0, C0 // G0
    for co in range(C1):
        g = co // opg
        w2d[:, co, g * ipg:(g + 1) * ipg] = w2[co, :, :, 0].T
    w3ad = np.zeros((C1, C1), np.float32)
    opg, ipg = C1 // G1, C1 // G1
    for co in range(C1):
        g = co // opg
        w3ad[co, g * ipg:(g + 1) * ipg] = w3a[co, :, 0, 0]

    # --- blocks 1+2: conv1+BN1+conv2+BN2 -> banded Toeplitz matrix ----------
    Wc = np.einsum('o,hoc,c,ct->oht', s2, w2d, s1, w1).reshape(C1, H * K)
    bc = s2 * np.einsum('hoc,c->o', w2d, t1) + t2                        # (C1,)
    T_big = np.zeros((KPAD, C1 * W1), np.float32)    # contraction dim padded
    j = np.arange(W1)
    for co in range(C1):
        for hh in range(H):
            for t in range(K):
                T_big[hh * W0 + t + j, co * W1 + j] = Wc[co, hh * K + t]
    bc_big = np.repeat(bc, W1).reshape(1, C1 * W1).astype(np.float32)

    # --- pool0 + conv3a + conv3b + BN3 -> one matrix -------------------------
    w3ab = s3[:, None] * (w3b @ w3ad)                                    # (C2, C1)
    P0big = np.kron(np.eye(C1, dtype=np.float32), _pool_mat(W1, P0))     # (C1*W1, C1*T2)
    W3big = np.kron(w3ab.T.astype(np.float32),
                    np.eye(T2, dtype=np.float32))                        # (C1*T2, C2*T2)
    M34 = (P0big @ W3big).astype(np.float32)                             # (512, 256)
    b3_big = np.repeat(t3, T2).reshape(1, C2 * T2).astype(np.float32)

    # --- pool1 + flatten + Linear(out1) + Linear(out2) -> one head matrix ----
    P1big = np.kron(np.eye(C2, dtype=np.float32), _pool_mat(T2, P1))     # (C2*T2, DIM)
    Wp1l1 = P1big @ wl1.T                                                # (256, DIM2)
    W_head = Wp1l1 @ wl2.T                                               # (256, NC)
    b_head = bl1 @ wl2.T + bl2                                           # (NC,)
    W_head_pad = np.zeros((C2 * T2, NCPAD), np.float32)
    W_head_pad[:, :NC] = W_head
    b_head_pad = np.zeros((1, NCPAD), np.float32)
    b_head_pad[0, :NC] = b_head

    return dict(
        T_big=jnp.asarray(T_big, dtype=jnp.bfloat16),
        bc_big=jnp.asarray(bc_big),
        M34=jnp.asarray(M34, dtype=jnp.bfloat16),
        b3_big=jnp.asarray(b3_big),
        W_head=jnp.asarray(W_head_pad, dtype=jnp.bfloat16),
        b_head=jnp.asarray(b_head_pad),
    )


# ---------------------------------------------------------------------------
# Deterministic parameter construction (synthetic, PyTorch-shaped)
# ---------------------------------------------------------------------------
def init_params(key):
    ks = jax.random.split(key, 11)
    w1_conv = jax.random.normal(ks[0], (C0, 1, 1, K), jnp.float32) * 0.3
    w2_conv = jax.random.normal(ks[1], (C1, C0 // G0, H, 1), jnp.float32) * 0.3
    w3a_conv = jax.random.normal(ks[2], (C1, C1 // G1, 1, 1), jnp.float32) * 0.3
    w3b_conv = jax.random.normal(ks[3], (C2, C1, 1, 1), jnp.float32) * 0.3

    def bn(k, c):
        k1, k2, k3, k4 = jax.random.split(k, 4)
        gamma = 1.0 + 0.1 * jax.random.normal(k1, (c,), jnp.float32)
        beta = 0.1 * jax.random.normal(k2, (c,), jnp.float32)
        mean = 0.1 * jax.random.normal(k3, (c,), jnp.float32)
        var = jax.random.uniform(k4, (c,), jnp.float32, minval=0.5, maxval=1.5)
        s = gamma / jnp.sqrt(var + EPS)        # eval-mode BN fold
        t = beta - mean * s
        return s, t

    s1, t1 = bn(ks[4], C0)
    s2, t2 = bn(ks[5], C1)
    s3, t3 = bn(ks[6], C2)

    wl1 = jax.random.normal(ks[7], (DIM2, DIM), jnp.float32) * 0.1
    bl1 = jax.random.normal(ks[8], (DIM2,), jnp.float32) * 0.1
    wl2 = jax.random.normal(ks[9], (NC, DIM2), jnp.float32) * 0.1
    bl2 = jax.random.normal(ks[10], (NC,), jnp.float32) * 0.1

    p = dict(w1_conv=w1_conv, w2_conv=w2_conv, w3a_conv=w3a_conv,
             w3b_conv=w3b_conv, wl1=wl1, bl1=bl1, wl2=wl2, bl2=bl2,
             s1=s1, t1=t1, s2=s2, t2=t2, s3=s3, t3=t3)
    p.update(fold_params(p))
    return p


# ---------------------------------------------------------------------------
# Pure-JAX reference (mirrors the PyTorch forward, eval mode, full f32)
# ---------------------------------------------------------------------------
def reference_forward(x, p):
    dn = ('NCHW', 'OIHW', 'NCHW')
    y = lax.conv_general_dilated(x, p['w1_conv'], (1, 1), 'VALID', dimension_numbers=dn)
    y = y * p['s1'][None, :, None, None] + p['t1'][None, :, None, None]
    y = lax.conv_general_dilated(y, p['w2_conv'], (1, 1), 'VALID',
                                 dimension_numbers=dn, feature_group_count=G0)
    y = y * p['s2'][None, :, None, None] + p['t2'][None, :, None, None]
    y = jnp.where(y > 0, y, jnp.exp(y) - 1.0)
    b_, c_, hh, ww = y.shape
    y = y.reshape(b_, c_, hh, ww // P0, P0).mean(axis=-1)
    y = lax.conv_general_dilated(y, p['w3a_conv'], (1, 1), 'VALID',
                                 dimension_numbers=dn, feature_group_count=G1)
    y = lax.conv_general_dilated(y, p['w3b_conv'], (1, 1), 'VALID', dimension_numbers=dn)
    y = y * p['s3'][None, :, None, None] + p['t3'][None, :, None, None]
    y = jnp.where(y > 0, y, jnp.exp(y) - 1.0)
    b_, c_, hh, ww = y.shape
    y = y.reshape(b_, c_, hh, ww // P1, P1).mean(axis=-1)
    flat = y.reshape(y.shape[0], -1)
    h = flat @ p['wl1'].T + p['bl1']
    logits = h @ p['wl2'].T + p['bl2']
    return jax.nn.softmax(logits, axis=1), logits


if __name__ == "__main__":
    key = jax.random.PRNGKey(0)
    k_par, k_x = jax.random.split(key)
    params = init_params(k_par)
    x = jax.random.normal(k_x, (B, 1, H, W0), jnp.float32)   # NCHW, like PyTorch

    probs, logits = jax.jit(eegnet_forward)(x, params)
    jax.block_until_ready((probs, logits))

    ref_probs, ref_logits = reference_forward(x, params)
    assert probs.shape == (B, NC) and logits.shape == (B, NC)
    # bf16 weights + approx reciprocal => slightly looser tolerances vs f32 ref
    assert np.allclose(np.asarray(logits), np.asarray(ref_logits), atol=3e-2, rtol=3e-2)
    assert np.allclose(np.asarray(probs), np.asarray(ref_probs), atol=1e-2, rtol=3e-2)
    print("KERNEL_OK")
</pallas_src>

<mosaic_0001>
module attributes {stable_mosaic.version = 11 : i64} {
  func.func @eegnet_kernel(%arg0: i32, %arg1: memref<8x160xf32, #tpu.memory_space<vmem>>, %arg2: memref<160x512xbf16, #tpu.memory_space<vmem>>, %arg3: memref<1x512xf32, #tpu.memory_space<vmem>>, %arg4: memref<512x256xbf16, #tpu.memory_space<vmem>>, %arg5: memref<1x256xf32, #tpu.memory_space<vmem>>, %arg6: memref<256x128xbf16, #tpu.memory_space<vmem>>, %arg7: memref<1x128xf32, #tpu.memory_space<vmem>>, %arg8: memref<8x256xf32, #tpu.memory_space<vmem>>) attributes {dimension_semantics = [#tpu.dimension_semantics<arbitrary>], iteration_bounds = array<i64: 1>, scalar_prefetch = 0 : i64, scratch_operands = 0 : i64, tpu.core_type = #tpu.core_type<tc>, window_params = [{pipeline_mode = #tpu.pipeline_mode<synchronous>, transform_indices = @transform_0, window_bounds = array<i64: 8, 160>}, {pipeline_mode = #tpu.pipeline_mode<synchronous>, transform_indices = @transform_1, window_bounds = array<i64: 160, 512>}, {pipeline_mode = #tpu.pipeline_mode<synchronous>, transform_indices = @transform_2, window_bounds = array<i64: 1, 512>}, {pipeline_mode = #tpu.pipeline_mode<synchronous>, transform_indices = @transform_3, window_bounds = array<i64: 512, 256>}, {pipeline_mode = #tpu.pipeline_mode<synchronous>, transform_indices = @transform_4, window_bounds = array<i64: 1, 256>}, {pipeline_mode = #tpu.pipeline_mode<synchronous>, transform_indices = @transform_5, window_bounds = array<i64: 256, 128>}, {pipeline_mode = #tpu.pipeline_mode<synchronous>, transform_indices = @transform_6, window_bounds = array<i64: 1, 128>}, {pipeline_mode = #tpu.pipeline_mode<synchronous>, transform_indices = @transform_7, window_bounds = array<i64: 8, 256>}]} {
    %c0 = arith.constant 0 : index
    %c0_0 = arith.constant 0 : index
    %0 = vector.load %arg1[%c0, %c0_0] : memref<8x160xf32, #tpu.memory_space<vmem>>, vector<8x160xf32>
    %1 = arith.truncf %0 : vector<8x160xf32> to vector<8x160xbf16>
    %c0_1 = arith.constant 0 : index
    %c0_2 = arith.constant 0 : index
    %2 = vector.load %arg2[%c0_1, %c0_2] : memref<160x512xbf16, #tpu.memory_space<vmem>>, vector<160x512xbf16>
    %cst = arith.constant dense<0.000000e+00> : vector<8x512xf32>
    %3 = tpu.matmul %1, %2, %cst {dimension_numbers = #tpu.dot_dimension_numbers<[1], [0], [0], [1], [0, 0, 1, 1], [], []>} : vector<8x160xbf16>, vector<160x512xbf16>, vector<8x512xf32> -> vector<8x512xf32>
    %c0_3 = arith.constant 0 : index
    %c0_4 = arith.constant 0 : index
    %4 = vector.load %arg3[%c0_3, %c0_4] : memref<1x512xf32, #tpu.memory_space<vmem>>, vector<1x512xf32>
    %5 = vector.broadcast %4 : vector<1x512xf32> to vector<8x512xf32>
    %6 = arith.addf %3, %5 : vector<8x512xf32>
    %cst_5 = arith.constant 0.000000e+00 : f32
    %7 = vector.broadcast %cst_5 : f32 to vector<8x512xf32>
    %8 = arith.cmpf ogt, %6, %7 : vector<8x512xf32>
    %cst_6 = arith.constant 0.000000e+00 : f32
    %9 = vector.broadcast %cst_6 : f32 to vector<8x512xf32>
    %10 = arith.minimumf %6, %9 : vector<8x512xf32>
    %11 = math.exp %10 : vector<8x512xf32>
    %cst_7 = arith.constant 1.000000e+00 : f32
    %12 = vector.broadcast %cst_7 : f32 to vector<8x512xf32>
    %13 = arith.subf %11, %12 : vector<8x512xf32>
    %14 = arith.select %8, %6, %13 : vector<8x512xi1>, vector<8x512xf32>
    %15 = arith.truncf %14 : vector<8x512xf32> to vector<8x512xbf16>
    %c0_8 = arith.constant 0 : index
    %c0_9 = arith.constant 0 : index
    %16 = vector.load %arg4[%c0_8, %c0_9] : memref<512x256xbf16, #tpu.memory_space<vmem>>, vector<512x256xbf16>
    %cst_10 = arith.constant dense<0.000000e+00> : vector<8x256xf32>
    %17 = tpu.matmul %15, %16, %cst_10 {dimension_numbers = #tpu.dot_dimension_numbers<[1], [0], [0], [1], [0, 0, 1, 1], [], []>} : vector<8x512xbf16>, vector<512x256xbf16>, vector<8x256xf32> -> vector<8x256xf32>
    %c0_11 = arith.constant 0 : index
    %c0_12 = arith.constant 0 : index
    %18 = vector.load %arg5[%c0_11, %c0_12] : memref<1x256xf32, #tpu.memory_space<vmem>>, vector<1x256xf32>
    %19 = vector.broadcast %18 : vector<1x256xf32> to vector<8x256xf32>
    %20 = arith.addf %17, %19 : vector<8x256xf32>
    %cst_13 = arith.constant 0.000000e+00 : f32
    %21 = vector.broadcast %cst_13 : f32 to vector<8x256xf32>
    %22 = arith.cmpf ogt, %20, %21 : vector<8x256xf32>
    %cst_14 = arith.constant 0.000000e+00 : f32
    %23 = vector.broadcast %cst_14 : f32 to vector<8x256xf32>
    %24 = arith.minimumf %20, %23 : vector<8x256xf32>
    %25 = math.exp %24 : vector<8x256xf32>
    %cst_15 = arith.constant 1.000000e+00 : f32
    %26 = vector.broadcast %cst_15 : f32 to vector<8x256xf32>
    %27 = arith.subf %25, %26 : vector<8x256xf32>
    %28 = arith.select %22, %20, %27 : vector<8x256xi1>, vector<8x256xf32>
    %29 = arith.truncf %28 : vector<8x256xf32> to vector<8x256xbf16>
    %c0_16 = arith.constant 0 : index
    %c0_17 = arith.constant 0 : index
    %30 = vector.load %arg6[%c0_16, %c0_17] : memref<256x128xbf16, #tpu.memory_space<vmem>>, vector<256x128xbf16>
    %cst_18 = arith.constant dense<0.000000e+00> : vector<8x128xf32>
    %31 = tpu.matmul %29, %30, %cst_18 {dimension_numbers = #tpu.dot_dimension_numbers<[1], [0], [0], [1], [0, 0, 1, 1], [], []>} : vector<8x256xbf16>, vector<256x128xbf16>, vector<8x128xf32> -> vector<8x128xf32>
    %c0_19 = arith.constant 0 : index
    %c0_20 = arith.constant 0 : index
    %32 = vector.load %arg7[%c0_19, %c0_20] : memref<1x128xf32, #tpu.memory_space<vmem>>, vector<1x128xf32>
    %33 = vector.broadcast %32 : vector<1x128xf32> to vector<8x128xf32>
    %34 = arith.addf %31, %33 : vector<8x128xf32>
    %35 = tpu.iota {dimensions = array<i32: 1>} : vector<8x128xi32>
    %c2_i32 = arith.constant 2 : i32
    %36 = vector.broadcast %c2_i32 : i32 to vector<8x128xi32>
    %37 = arith.cmpi slt, %35, %36 : vector<8x128xi32>
    %cst_21 = arith.constant 0xFF800000 : f32
    %38 = vector.broadcast %cst_21 : f32 to vector<8x128xf32>
    %39 = arith.select %37, %34, %38 : vector<8x128xi1>, vector<8x128xf32>
    %cst_22 = arith.constant dense<0xFF800000> : vector<8xf32>
    %40 = vector.multi_reduction <maximumf>, %39, %cst_22 [1] : vector<8x128xf32> to vector<8xf32>
    %41 = vector.shape_cast %40 : vector<8xf32> to vector<8x1xf32>
    %42 = vector.broadcast %41 : vector<8x1xf32> to vector<8x128xf32>
    %43 = arith.subf %34, %42 : vector<8x128xf32>
    %44 = math.exp %43 : vector<8x128xf32>
    %cst_23 = arith.constant 0.000000e+00 : f32
    %45 = vector.broadcast %cst_23 : f32 to vector<8x128xf32>
    %46 = arith.select %37, %44, %45 : vector<8x128xi1>, vector<8x128xf32>
    %cst_24 = arith.constant dense<0.000000e+00> : vector<8xf32>
    %47 = vector.multi_reduction <add>, %46, %cst_24 [1] : vector<8x128xf32> to vector<8xf32>
    %48 = vector.shape_cast %47 : vector<8xf32> to vector<8x1xf32>
    %49 = tpu.reciprocal %48 {approx = true} : vector<8x1xf32> -> vector<8x1xf32>
    %50 = vector.broadcast %49 : vector<8x1xf32> to vector<8x128xf32>
    %51 = arith.mulf %46, %50 : vector<8x128xf32>
    %c0_25 = arith.constant 0 : index
    %c0_26 = arith.constant 0 : index
    %52 = vector.load %arg8[%c0_25, %c0_26] : memref<8x256xf32, #tpu.memory_space<vmem>>, vector<8x128xf32>
    tpu.vector_store %arg8[%c0_25, %c0_26], %34 {strides = array<i32>} : memref<8x256xf32, #tpu.memory_space<vmem>>, vector<8x128xf32>,
    %c0_27 = arith.constant 0 : index
    %c128 = arith.constant 128 : index
    %53 = vector.load %arg8[%c0_27, %c128] : memref<8x256xf32, #tpu.memory_space<vmem>>, vector<8x128xf32>
    tpu.vector_store %arg8[%c0_27, %c128], %51 {strides = array<i32>} : memref<8x256xf32, #tpu.memory_space<vmem>>, vector<8x128xf32>,
    return
  }
  func.func @transform_0(%arg0: i32) -> (i32, i32) {
    %c0_i32 = arith.constant 0 : i32
    %c0_i32_0 = arith.constant 0 : i32
    %c0_i32_1 = arith.constant 0 : i32
    return %c0_i32, %c0_i32_0 : i32, i32
  }
  func.func @transform_1(%arg0: i32) -> (i32, i32) {
    %c0_i32 = arith.constant 0 : i32
    %c0_i32_0 = arith.constant 0 : i32
    %c0_i32_1 = arith.constant 0 : i32
    return %c0_i32, %c0_i32_0 : i32, i32
  }
  func.func @transform_2(%arg0: i32) -> (i32, i32) {
    %c0_i32 = arith.constant 0 : i32
    %c0_i32_0 = arith.constant 0 : i32
    %c0_i32_1 = arith.constant 0 : i32
    return %c0_i32, %c0_i32_0 : i32, i32
  }
  func.func @transform_3(%arg0: i32) -> (i32, i32) {
    %c0_i32 = arith.constant 0 : i32
    %c0_i32_0 = arith.constant 0 : i32
    %c0_i32_1 = arith.constant 0 : i32
    return %c0_i32, %c0_i32_0 : i32, i32
  }
  func.func @transform_4(%arg0: i32) -> (i32, i32) {
    %c0_i32 = arith.constant 0 : i32
    %c0_i32_0 = arith.constant 0 : i32
    %c0_i32_1 = arith.constant 0 : i32
    return %c0_i32, %c0_i32_0 : i32, i32
  }
  func.func @transform_5(%arg0: i32) -> (i32, i32) {
    %c0_i32 = arith.constant 0 : i32
    %c0_i32_0 = arith.constant 0 : i32
    %c0_i32_1 = arith.constant 0 : i32
    return %c0_i32, %c0_i32_0 : i32, i32
  }
  func.func @transform_6(%arg0: i32) -> (i32, i32) {
    %c0_i32 = arith.constant 0 : i32
    %c0_i32_0 = arith.constant 0 : i32
    %c0_i32_1 = arith.constant 0 : i32
    return %c0_i32, %c0_i32_0 : i32, i32
  }
  func.func @transform_7(%arg0: i32) -> (i32, i32) {
    %c0_i32 = arith.constant 0 : i32
    %c0_i32_0 = arith.constant 0 : i32
    %c0_i32_1 = arith.constant 0 : i32
    return %c0_i32, %c0_i32_0 : i32, i32
  }
}

</mosaic_0001>

<llo_original>
// kernel: eegnet_forward.1
$region0: #{eegnet_forward.1}
  #allocation0 [shape = 'u32[]', space=smem, size = 0x4, offset = 0x4, fixed_abs, tag = 'smem constant byte address 0x4 - core index']
  #allocation1 [shape = 'u32[72,128]{1,0:T(1,128)}', space=vmem, size = 0x9000, scoped, tag = 'internal scratch']
  %s0 = inlined_call_operand.vmem [shape: f32[8,160], index: 0, kind: input, shape index: {}]
  %s1 = inlined_call_operand.hbm [shape: bf16[160,512], index: 1, kind: input, shape index: {}]
  %s2 = inlined_call_operand.vmem [shape: f32[1,512], index: 2, kind: input, shape index: {}]
  %s3 = inlined_call_operand.hbm [shape: bf16[512,256], index: 3, kind: input, shape index: {}]
  %s4 = inlined_call_operand.vmem [shape: f32[1,256], index: 4, kind: input, shape index: {}]
  %s5 = inlined_call_operand.hbm [shape: bf16[256,128], index: 5, kind: input, shape index: {}]
  %s6 = inlined_call_operand.vmem [shape: f32[1,128], index: 6, kind: input, shape index: {}]
  %s7 = inlined_call_operand.vmem [shape: f32[8,256], index: 7, kind: output, shape index: {}]
  %s8 = sld [smem:[#allocation0]]
  $region50: #{eegnet_forward.1} parent=0
    _
  %s10 = ssub.s32 1, %s8
  %s11 = scalar_select 0, %s10, %s8
  $region1: #{eegnet_forward.1} parent=0
    #allocation2 [shape = 'u8[163840]{0}', space=vmem, size = 0x28000, scoped, tag = 'input window, operand 1, single buffered']
    #allocation3 [shape = 's32[1]{0}', space=sflag, size = 0x4, scoped, tag = 'scoped memory for eegnet_forward.1']
    #allocation4 [shape = 'u8[262144]{0}', space=vmem, size = 0x40000, scoped, tag = 'input window, operand 3, single buffered']
    #allocation5 [shape = 's32[1]{0}', space=sflag, size = 0x4, scoped, tag = 'scoped memory for eegnet_forward.1']
    #allocation6 [shape = 'u8[65536]{0}', space=vmem, size = 0x10000, scoped, tag = 'input window, operand 5, single buffered']
    %12 = vsyncpa [#allocation3], 0
    %13 = vsyncpa [#allocation5], 0
    // Predicated region
    $region2: #{eegnet_forward.1} parent=1 // pred_check
      _
    $region3: #{eegnet_forward.1} parent=1 // pred_check_branch
      %15 = sbr.rel (0) target = $region5
    $region4: #{eegnet_forward.1} parent=1 // pred_region
      _
    $region5: #{eegnet_forward.1} parent=1 // pred_fallthru
      _
    // Predicated region
    $region6: #{eegnet_forward.1} parent=1 // pred_check
      _
    $region7: #{eegnet_forward.1} parent=1 // pred_check_branch
      %17 = sbr.rel (0) target = $region9
    $region8: #{eegnet_forward.1} parent=1 // pred_region
      %19 = vsyncadd [#allocation3], 0
      %s20 = sshll.u32 %s1, 4
      %s21 = int_to_ptr.hbm [resolvable:$true] %s20
      %s22 = sshll.u32 [#allocation2], 4
      %s23 = int_to_ptr.vmem [resolvable:$true] %s22
      %28 = dma.hbm_to_vmem [thread:$0]  %s21, 5120, %s23, [#allocation3], 256, 256, 16
    $region9: #{eegnet_forward.1} parent=1 // pred_fallthru
      _
    // Predicated region
    $region10: #{eegnet_forward.1} parent=1 // pred_check
      _
    $region11: #{eegnet_forward.1} parent=1 // pred_check_branch
      %30 = sbr.rel (0) target = $region13
    $region12: #{eegnet_forward.1} parent=1 // pred_region
      _
    $region13: #{eegnet_forward.1} parent=1 // pred_fallthru
      _
    // Predicated region
    $region14: #{eegnet_forward.1} parent=1 // pred_check
      _
    $region15: #{eegnet_forward.1} parent=1 // pred_check_branch
      %32 = sbr.rel (0) target = $region17
    $region16: #{eegnet_forward.1} parent=1 // pred_region
      %34 = vsyncadd [#allocation5], 0
      %s35 = sshll.u32 %s3, 4
      %s36 = int_to_ptr.hbm [resolvable:$true] %s35
      %s37 = sshll.u32 [#allocation4], 4
      %s38 = int_to_ptr.vmem [resolvable:$true] %s37
      %43 = dma.hbm_to_vmem [thread:$0]  %s36, 8192, %s38, [#allocation5], 128, 128, 8
    $region17: #{eegnet_forward.1} parent=1 // pred_fallthru
      _
    // Predicated region
    $region18: #{eegnet_forward.1} parent=1 // pred_check
      _
    $region19: #{eegnet_forward.1} parent=1 // pred_check_branch
      %45 = sbr.rel (0) target = $region21
    $region20: #{eegnet_forward.1} parent=1 // pred_region
      _
    $region21: #{eegnet_forward.1} parent=1 // pred_fallthru
      _
    // Predicated region
    $region22: #{eegnet_forward.1} parent=1 // pred_check
      _
    $region23: #{eegnet_forward.1} parent=1 // pred_check_branch
      %47 = sbr.rel (0) target = $region25
    $region24: #{eegnet_forward.1} parent=1 // pred_region
      %49 = vsyncadd [#allocation5], 0
      %s50 = sshll.u32 %s5, 4
      %s51 = int_to_ptr.hbm [resolvable:$true] %s50
      %s52 = sshll.u32 [#allocation6], 4
      %s53 = int_to_ptr.vmem [resolvable:$true] %s52
      %58 = dma.hbm_to_vmem [thread:$0]  %s51, 2048, %s53, [#allocation5], 64, 64, 4
    $region25: #{eegnet_forward.1} parent=1 // pred_fallthru
      _
    // Predicated region
    $region26: #{eegnet_forward.1} parent=1 // pred_check
      _
    $region27: #{eegnet_forward.1} parent=1 // pred_check_branch
      %60 = sbr.rel (0) target = $region29
    $region28: #{eegnet_forward.1} parent=1 // pred_region
      _
    $region29: #{eegnet_forward.1} parent=1 // pred_fallthru
      _
    // Predicated region
    $region30: #{eegnet_forward.1} parent=1 // pred_check
      _
    $region31: #{eegnet_forward.1} parent=1 // pred_check_branch
      %62 = sbr.rel (0) target = $region33
    $region32: #{eegnet_forward.1} parent=1 // pred_region
      %64 = dma.done [#allocation3], 5120
    $region33: #{eegnet_forward.1} parent=1 // pred_fallthru
      _
    // Predicated region
    $region34: #{eegnet_forward.1} parent=1 // pred_check
      _
    $region35: #{eegnet_forward.1} parent=1 // pred_check_branch
      %66 = sbr.rel (0) target = $region37
    $region36: #{eegnet_forward.1} parent=1 // pred_region
      %68 = dma.done [#allocation5], 8192
    $region37: #{eegnet_forward.1} parent=1 // pred_fallthru
      _
    // Predicated region
    $region38: #{eegnet_forward.1} parent=1 // pred_check
      _
    $region39: #{eegnet_forward.1} parent=1 // pred_check_branch
      %70 = sbr.rel (0) target = $region41
    $region40: #{eegnet_forward.1} parent=1 // pred_region
      %72 = dma.done [#allocation5], 2048
    $region41: #{eegnet_forward.1} parent=1 // pred_fallthru
      _
    %v74 = vld [vmem:[%s0] sm:$0xff]
    %v75 = vld [vmem:[%s0 + $0x8] sm:$0xff]
    %v76 = vpack.c.bf16 %v74, %v74
    %v77 = vpack.c.bf16 %v75, %v75
    %v78 = vld [vmem:[#allocation2] sm:$0xff]
    %v79 = vld [vmem:[#allocation2 + $0x8] sm:$0xff]
    %v80 = vld [vmem:[#allocation2 + $0x10] sm:$0xff]
    %v81 = vld [vmem:[#allocation2 + $0x18] sm:$0xff]
    %v82 = vld [vmem:[#allocation2 + $0x20] sm:$0xff]
    %v83 = vld [vmem:[#allocation2 + $0x28] sm:$0xff]
    %v84 = vld [vmem:[#allocation2 + $0x30] sm:$0xff]
    %v85 = vld [vmem:[#allocation2 + $0x38] sm:$0xff]
    %v86 = vld [vmem:[#allocation2 + $0x40] sm:$0xff]
    %v87 = vld [vmem:[#allocation2 + $0x48] sm:$0xff]
    %v88 = vld [vmem:[#allocation2 + $0x50] sm:$0xff]
    %v89 = vld [vmem:[#allocation2 + $0x58] sm:$0xff]
    %v90 = vld [vmem:[#allocation2 + $0x60] sm:$0xff]
    %v91 = vld [vmem:[#allocation2 + $0x68] sm:$0xff]
    %v92 = vld [vmem:[#allocation2 + $0x70] sm:$0xff]
    %v93 = vld [vmem:[#allocation2 + $0x78] sm:$0xff]
    %v94 = vld [vmem:[#allocation2 + $0x80] sm:$0xff]
    %v95 = vld [vmem:[#allocation2 + $0x88] sm:$0xff]
    %v96 = vld [vmem:[#allocation2 + $0x90] sm:$0xff]
    %v97 = vld [vmem:[#allocation2 + $0x98] sm:$0xff]
    %v98 = vld [vmem:[#allocation2 + $0xa0] sm:$0xff]
    %v99 = vld [vmem:[#allocation2 + $0xa8] sm:$0xff]
    %v100 = vld [vmem:[#allocation2 + $0xb0] sm:$0xff]
    %v101 = vld [vmem:[#allocation2 + $0xb8] sm:$0xff]
    %v102 = vld [vmem:[#allocation2 + $0xc0] sm:$0xff]
    %v103 = vld [vmem:[#allocation2 + $0xc8] sm:$0xff]
    %v104 = vld [vmem:[#allocation2 + $0xd0] sm:$0xff]
    %v105 = vld [vmem:[#allocation2 + $0xd8] sm:$0xff]
    %v106 = vld [vmem:[#allocation2 + $0xe0] sm:$0xff]
    %v107 = vld [vmem:[#allocation2 + $0xe8] sm:$0xff]
    %v108 = vld [vmem:[#allocation2 + $0xf0] sm:$0xff]
    %v109 = vld [vmem:[#allocation2 + $0xf8] sm:$0xff]
    %v110 = vld [vmem:[#allocation2 + $0x100] sm:$0xff]
    %v111 = vld [vmem:[#allocation2 + $0x108] sm:$0xff]
    %v112 = vld [vmem:[#allocation2 + $0x110] sm:$0xff]
    %v113 = vld [vmem:[#allocation2 + $0x118] sm:$0xff]
    %v114 = vld [vmem:[#allocation2 + $0x120] sm:$0xff]
    %v115 = vld [vmem:[#allocation2 + $0x128] sm:$0xff]
    %v116 = vld [vmem:[#allocation2 + $0x130] sm:$0xff]
    %v117 = vld [vmem:[#allocation2 + $0x138] sm:$0xff]
    %v118 = vld [vmem:[%s2] sm:$0xf]
    %v120 = vperm.slane %v118, 0
    %v121 = vperm.slane %v118, 1
    %v122 = vperm.slane %v118, 2
    %v123 = vperm.slane %v118, 3
    %v168 = vunpack.c.l.b16 %v78
    %v169 = vunpack.c.h.b16 %v78
    %v170 = vunpack.c.l.b16 %v79
    %v171 = vunpack.c.h.b16 %v79
    %v172 = vunpack.c.l.b16 %v80
    %v173 = vunpack.c.h.b16 %v80
    %v174 = vunpack.c.l.b16 %v81
    %v175 = vunpack.c.h.b16 %v81
    %v176 = vunpack.c.l.b16 %v82
    %v177 = vunpack.c.h.b16 %v82
    %v178 = vunpack.c.l.b16 %v83
    %v179 = vunpack.c.h.b16 %v83
    %v180 = vunpack.c.l.b16 %v84
    %v181 = vunpack.c.h.b16 %v84
    %v182 = vunpack.c.l.b16 %v85
    %v183 = vunpack.c.h.b16 %v85
    %v184 = vunpack.c.l.b16 %v86
    %v185 = vunpack.c.h.b16 %v86
    %v186 = vunpack.c.l.b16 %v87
    %v187 = vunpack.c.h.b16 %v87
    %v188 = vunpack.c.l.b16 %v88
    %v189 = vunpack.c.h.b16 %v88
    %v190 = vunpack.c.l.b16 %v89
    %v191 = vunpack.c.h.b16 %v89
    %v192 = vunpack.c.l.b16 %v90
    %v193 = vunpack.c.h.b16 %v90
    %v194 = vunpack.c.l.b16 %v91
    %v195 = vunpack.c.h.b16 %v91
    %v196 = vunpack.c.l.b16 %v92
    %v197 = vunpack.c.h.b16 %v92
    %v198 = vunpack.c.l.b16 %v93
    %v199 = vunpack.c.h.b16 %v93
    %v200 = vunpack.c.l.b16 %v94
    %v201 = vunpack.c.h.b16 %v94
    %v202 = vunpack.c.l.b16 %v95
    %v203 = vunpack.c.h.b16 %v95
    %v204 = vunpack.c.l.b16 %v96
    %v205 = vunpack.c.h.b16 %v96
    %v206 = vunpack.c.l.b16 %v97
    %v207 = vunpack.c.h.b16 %v97
    %v208 = vunpack.c.l.b16 %v98
    %v209 = vunpack.c.h.b16 %v98
    %v210 = vunpack.c.l.b16 %v99
    %v211 = vunpack.c.h.b16 %v99
    %v212 = vunpack.c.l.b16 %v100
    %v213 = vunpack.c.h.b16 %v100
    %v214 = vunpack.c.l.b16 %v101
    %v215 = vunpack.c.h.b16 %v101
    %v216 = vunpack.c.l.b16 %v102
    %v217 = vunpack.c.h.b16 %v102
    %v218 = vunpack.c.l.b16 %v103
    %v219 = vunpack.c.h.b16 %v103
    %v220 = vunpack.c.l.b16 %v104
    %v221 = vunpack.c.h.b16 %v104
    %v222 = vunpack.c.l.b16 %v105
    %v223 = vunpack.c.h.b16 %v105
    %v224 = vunpack.c.l.b16 %v106
    %v225 = vunpack.c.h.b16 %v106
    %v226 = vunpack.c.l.b16 %v107
    %v227 = vunpack.c.h.b16 %v107
    %v228 = vunpack.c.l.b16 %v108
    %v229 = vunpack.c.h.b16 %v108
    %v230 = vunpack.c.l.b16 %v109
    %v231 = vunpack.c.h.b16 %v109
    %v232 = vunpack.c.l.b16 %v110
    %v233 = vunpack.c.h.b16 %v110
    %v234 = vunpack.c.l.b16 %v111
    %v235 = vunpack.c.h.b16 %v111
    %v236 = vunpack.c.l.b16 %v112
    %v237 = vunpack.c.h.b16 %v112
    %v238 = vunpack.c.l.b16 %v113
    %v239 = vunpack.c.h.b16 %v113
    %v240 = vunpack.c.l.b16 %v114
    %v241 = vunpack.c.h.b16 %v114
    %v242 = vunpack.c.l.b16 %v115
    %v243 = vunpack.c.h.b16 %v115
    %v244 = vunpack.c.l.b16 %v116
    %v245 = vunpack.c.h.b16 %v116
    %v246 = vunpack.c.l.b16 %v117
    %v247 = vunpack.c.h.b16 %v117
    %v248 = vpack.c.b16 %v172, %v168
    %v249 = vpack.c.b16 %v173, %v169
    %v250 = vpack.c.b16 %v174, %v170
    %v251 = vpack.c.b16 %v175, %v171
    %v252 = vpack.c.b16 %v180, %v176
    %v253 = vpack.c.b16 %v181, %v177
    %v254 = vpack.c.b16 %v182, %v178
    %v255 = vpack.c.b16 %v183, %v179
    %v256 = vpack.c.b16 %v188, %v184
    %v257 = vpack.c.b16 %v189, %v185
    %v258 = vpack.c.b16 %v190, %v186
    %v259 = vpack.c.b16 %v191, %v187
    %v260 = vpack.c.b16 %v196, %v192
    %v261 = vpack.c.b16 %v197, %v193
    %v262 = vpack.c.b16 %v198, %v194
    %v263 = vpack.c.b16 %v199, %v195
    %v264 = vpack.c.b16 %v204, %v200
    %v265 = vpack.c.b16 %v205, %v201
    %v266 = vpack.c.b16 %v206, %v202
    %v267 = vpack.c.b16 %v207, %v203
    %v268 = vpack.c.b16 %v212, %v208
    %v269 = vpack.c.b16 %v213, %v209
    %v270 = vpack.c.b16 %v214, %v210
    %v271 = vpack.c.b16 %v215, %v211
    %v272 = vpack.c.b16 %v220, %v216
    %v273 = vpack.c.b16 %v221, %v217
    %v274 = vpack.c.b16 %v222, %v218
    %v275 = vpack.c.b16 %v223, %v219
    %v276 = vpack.c.b16 %v228, %v224
    %v277 = vpack.c.b16 %v229, %v225
    %v278 = vpack.c.b16 %v230, %v226
    %v279 = vpack.c.b16 %v231, %v227
    %v280 = vpack.c.b16 %v236, %v232
    %v281 = vpack.c.b16 %v237, %v233
    %v282 = vpack.c.b16 %v238, %v234
    %v283 = vpack.c.b16 %v239, %v235
    %v284 = vpack.c.b16 %v244, %v240
    %v285 = vpack.c.b16 %v245, %v241
    %v286 = vpack.c.b16 %v246, %v242
    %v287 = vpack.c.b16 %v247, %v243
    %vm328 = vcmask 261120
    %v330 = vsel %vm328, %v77, 0
    %332 = vmatpush.bf16.msra.mxu0 %v276
    %333 = vmatpush.bf16.msra.mxu0 %v272
    %334 = vmatpush.bf16.msra.mxu0 %v268
    %335 = vmatpush.bf16.msra.mxu0 %v264
    %336 = vmatpush.bf16.msra.mxu0 %v260
    %337 = vmatpush.bf16.msra.mxu0 %v256
    %338 = vmatpush.bf16.msra.mxu0 %v252
    %339 = vmatpush.bf16.msra.mxu0 %v248
    %340 = vmatmul.bf16.gmra.mxu0 %v76
    %v341 = vpop.f32.mrf.mxu0
    %v342 = vadd.f32 %v120, %v341
    %v343 = vpop.f32.mrf.mxu0
    %344 = vdwg.mxu0
    %345 = vmatpush.bf16.msra.mxu0 0
    %346 = vmatpush.bf16.msra.mxu0 0
    %347 = vmatpush.bf16.msra.mxu0 0
    %348 = vmatpush.bf16.msra.mxu0 0
    %349 = vmatpush.bf16.msra.mxu0 0
    %350 = vmatpush.bf16.msra.mxu0 0
    %351 = vmatpush.bf16.msra.mxu0 %v284
    %352 = vmatpush.bf16.msra.mxu0 %v280
    %353 = vmatmul.bf16.gmra.mxu0 %v330
    %v354 = vpop.f32.mrf.mxu0
    %v355 = vadd.f32 %v342, %v354
    %v356 = vpop.f32.mrf.mxu0
    %357 = vdwg.mxu0
    %358 = vmatpush.bf16.msra.mxu0 %v277
    %359 = vmatpush.bf16.msra.mxu0 %v273
    %360 = vmatpush.bf16.msra.mxu0 %v269
    %361 = vmatpush.bf16.msra.mxu0 %v265
    %362 = vmatpush.bf16.msra.mxu0 %v261
    %363 = vmatpush.bf16.msra.mxu0 %v257
    %364 = vmatpush.bf16.msra.mxu0 %v253
    %365 = vmatpush.bf16.msra.mxu0 %v249
    %366 = vmatmul.bf16.gmra.mxu0 %v76
    %v367 = vpop.f32.mrf.mxu0
    %v368 = vadd.f32 %v121, %v367
    %v369 = vpop.f32.mrf.mxu0
    %370 = vdwg.mxu0
    %371 = vmatpush.bf16.msra.mxu0 0
    %372 = vmatpush.bf16.msra.mxu0 0
    %373 = vmatpush.bf16.msra.mxu0 0
    %374 = vmatpush.bf16.msra.mxu0 0
    %375 = vmatpush.bf16.msra.mxu0 0
    %376 = vmatpush.bf16.msra.mxu0 0
    %377 = vmatpush.bf16.msra.mxu0 %v285
    %378 = vmatpush.bf16.msra.mxu0 %v281
    %379 = vmatmul.bf16.gmra.mxu0 %v330
    %v380 = vpop.f32.mrf.mxu0
    %v381 = vadd.f32 %v368, %v380
    %v382 = vpop.f32.mrf.mxu0
    %383 = vdwg.mxu0
    %384 = vmatpush.bf16.msra.mxu0 %v278
    %385 = vmatpush.bf16.msra.mxu0 %v274
    %386 = vmatpush.bf16.msra.mxu0 %v270
    %387 = vmatpush.bf16.msra.mxu0 %v266
    %388 = vmatpush.bf16.msra.mxu0 %v262
    %389 = vmatpush.bf16.msra.mxu0 %v258
    %390 = vmatpush.bf16.msra.mxu0 %v254
    %391 = vmatpush.bf16.msra.mxu0 %v250
    %392 = vmatmul.bf16.gmra.mxu0 %v76
    %v393 = vpop.f32.mrf.mxu0
    %v394 = vadd.f32 %v122, %v393
    %v395 = vpop.f32.mrf.mxu0
    %396 = vdwg.mxu0
    %397 = vmatpush.bf16.msra.mxu0 0
    %398 = vmatpush.bf16.msra.mxu0 0
    %399 = vmatpush.bf16.msra.mxu0 0
    %400 = vmatpush.bf16.msra.mxu0 0
    %401 = vmatpush.bf16.msra.mxu0 0
    %402 = vmatpush.bf16.msra.mxu0 0
    %403 = vmatpush.bf16.msra.mxu0 %v286
    %404 = vmatpush.bf16.msra.mxu0 %v282
    %405 = vmatmul.bf16.gmra.mxu0 %v330
    %v406 = vpop.f32.mrf.mxu0
    %v407 = vadd.f32 %v394, %v406
    %v408 = vpop.f32.mrf.mxu0
    %409 = vdwg.mxu0
    %410 = vmatpush.bf16.msra.mxu0 %v279
    %411 = vmatpush.bf16.msra.mxu0 %v275
    %412 = vmatpush.bf16.msra.mxu0 %v271
    %413 = vmatpush.bf16.msra.mxu0 %v267
    %414 = vmatpush.bf16.msra.mxu0 %v263
    %415 = vmatpush.bf16.msra.mxu0 %v259
    %416 = vmatpush.bf16.msra.mxu0 %v255
    %417 = vmatpush.bf16.msra.mxu0 %v251
    %418 = vmatmul.bf16.gmra.mxu0 %v76
    %v419 = vpop.f32.mrf.mxu0
    %v420 = vadd.f32 %v123, %v419
    %v421 = vpop.f32.mrf.mxu0
    %422 = vdwg.mxu0
    %423 = vmatpush.bf16.msra.mxu0 0
    %424 = vmatpush.bf16.msra.mxu0 0
    %425 = vmatpush.bf16.msra.mxu0 0
    %426 = vmatpush.bf16.msra.mxu0 0
    %427 = vmatpush.bf16.msra.mxu0 0
    %428 = vmatpush.bf16.msra.mxu0 0
    %429 = vmatpush.bf16.msra.mxu0 %v287
    %430 = vmatpush.bf16.msra.mxu0 %v283
    %431 = vmatmul.bf16.gmra.mxu0 %v330
    %v432 = vpop.f32.mrf.mxu0
    %v433 = vadd.f32 %v420, %v432
    %v434 = vpop.f32.mrf.mxu0
    %435 = vdwg.mxu0
    %vm436 = vcmp.gt.f32.partialorder %v355, 0.0
    %vm437 = vcmp.gt.f32.partialorder %v381, 0.0
    %vm438 = vcmp.gt.f32.partialorder %v407, 0.0
    %vm439 = vcmp.gt.f32.partialorder %v433, 0.0
    %v440 = vmin.f32 %v355, 0.0
    %v441 = vmin.f32 %v381, 0.0
    %v442 = vmin.f32 %v407, 0.0
    %v443 = vmin.f32 %v433, 0.0
    %v444 = vmul.f32 %v440, 1.442695
    %v445 = vpow.pop %v444
    %v446 = vmul.f32 %v441, 1.442695
    %v447 = vpow.pop %v446
    %v448 = vmul.f32 %v442, 1.442695
    %v449 = vpow.pop %v448
    %v450 = vmul.f32 %v443, 1.442695
    %v451 = vpow.pop %v450
    %v452 = vsub.f32 %v445, 1.0
    %v453 = vsub.f32 %v447, 1.0
    %v454 = vsub.f32 %v449, 1.0
    %v455 = vsub.f32 %v451, 1.0
    %v456 = vsel %vm436, %v355, %v452
    %v457 = vsel %vm437, %v381, %v453
    %v458 = vsel %vm438, %v407, %v454
    %v459 = vsel %vm439, %v433, %v455
    %v460 = vpack.c.bf16 %v456, %v456
    %v461 = vpack.c.bf16 %v457, %v457
    %v462 = vpack.c.bf16 %v458, %v458
    %v463 = vpack.c.bf16 %v459, %v459
    %v464 = vld [vmem:[#allocation4] sm:$0xff]
    %v465 = vld [vmem:[#allocation4 + $0x8] sm:$0xff]
    %v466 = vld [vmem:[#allocation4 + $0x10] sm:$0xff]
    %v467 = vld [vmem:[#allocation4 + $0x18] sm:$0xff]
    %v468 = vld [vmem:[#allocation4 + $0x20] sm:$0xff]
    %v469 = vld [vmem:[#allocation4 + $0x28] sm:$0xff]
    %v470 = vld [vmem:[#allocation4 + $0x30] sm:$0xff]
    %v471 = vld [vmem:[#allocation4 + $0x38] sm:$0xff]
    %v472 = vld [vmem:[#allocation4 + $0x40] sm:$0xff]
    %v473 = vld [vmem:[#allocation4 + $0x48] sm:$0xff]
    %v474 = vld [vmem:[#allocation4 + $0x50] sm:$0xff]
    %v475 = vld [vmem:[#allocation4 + $0x58] sm:$0xff]
    %v476 = vld [vmem:[#allocation4 + $0x60] sm:$0xff]
    %v477 = vld [vmem:[#allocation4 + $0x68] sm:$0xff]
    %v478 = vld [vmem:[#allocation4 + $0x70] sm:$0xff]
    %v479 = vld [vmem:[#allocation4 + $0x78] sm:$0xff]
    %v480 = vld [vmem:[#allocation4 + $0x80] sm:$0xff]
    %v481 = vld [vmem:[#allocation4 + $0x88] sm:$0xff]
    %v482 = vld [vmem:[#allocation4 + $0x90] sm:$0xff]
    %v483 = vld [vmem:[#allocation4 + $0x98] sm:$0xff]
    %v484 = vld [vmem:[#allocation4 + $0xa0] sm:$0xff]
    %v485 = vld [vmem:[#allocation4 + $0xa8] sm:$0xff]
    %v486 = vld [vmem:[#allocation4 + $0xb0] sm:$0xff]
    %v487 = vld [vmem:[#allocation4 + $0xb8] sm:$0xff]
    %v488 = vld [vmem:[#allocation4 + $0xc0] sm:$0xff]
    %v489 = vld [vmem:[#allocation4 + $0xc8] sm:$0xff]
    %v490 = vld [vmem:[#allocation4 + $0xd0] sm:$0xff]
    %v491 = vld [vmem:[#allocation4 + $0xd8] sm:$0xff]
    %v492 = vld [vmem:[#allocation4 + $0xe0] sm:$0xff]
    %v493 = vld [vmem:[#allocation4 + $0xe8] sm:$0xff]
    %v494 = vld [vmem:[#allocation4 + $0xf0] sm:$0xff]
    %v495 = vld [vmem:[#allocation4 + $0xf8] sm:$0xff]
    %v496 = vld [vmem:[#allocation4 + $0x100] sm:$0xff]
    %v497 = vld [vmem:[#allocation4 + $0x108] sm:$0xff]
    %v498 = vld [vmem:[#allocation4 + $0x110] sm:$0xff]
    %v499 = vld [vmem:[#allocation4 + $0x118] sm:$0xff]
    %v500 = vld [vmem:[#allocation4 + $0x120] sm:$0xff]
    %v501 = vld [vmem:[#allocation4 + $0x128] sm:$0xff]
    %v502 = vld [vmem:[#allocation4 + $0x130] sm:$0xff]
    %v503 = vld [vmem:[#allocation4 + $0x138] sm:$0xff]
    %v504 = vld [vmem:[#allocation4 + $0x140] sm:$0xff]
    %v505 = vld [vmem:[#allocation4 + $0x148] sm:$0xff]
    %v506 = vld [vmem:[#allocation4 + $0x150] sm:$0xff]
    %v507 = vld [vmem:[#allocation4 + $0x158] sm:$0xff]
    %v508 = vld [vmem:[#allocation4 + $0x160] sm:$0xff]
    %v509 = vld [vmem:[#allocation4 + $0x168] sm:$0xff]
    %v510 = vld [vmem:[#allocation4 + $0x170] sm:$0xff]
    %v511 = vld [vmem:[#allocation4 + $0x178] sm:$0xff]
    %v512 = vld [vmem:[#allocation4 + $0x180] sm:$0xff]
    %v513 = vld [vmem:[#allocation4 + $0x188] sm:$0xff]
    %v514 = vld [vmem:[#allocation4 + $0x190] sm:$0xff]
    %v515 = vld [vmem:[#allocation4 + $0x198] sm:$0xff]
    %v516 = vld [vmem:[#allocation4 + $0x1a0] sm:$0xff]
    %v517 = vld [vmem:[#allocation4 + $0x1a8] sm:$0xff]
    %v518 = vld [vmem:[#allocation4 + $0x1b0] sm:$0xff]
    %v519 = vld [vmem:[#allocation4 + $0x1b8] sm:$0xff]
    %v520 = vld [vmem:[#allocation4 + $0x1c0] sm:$0xff]
    %v521 = vld [vmem:[#allocation4 + $0x1c8] sm:$0xff]
    %v522 = vld [vmem:[#allocation4 + $0x1d0] sm:$0xff]
    %v523 = vld [vmem:[#allocation4 + $0x1d8] sm:$0xff]
    %v524 = vld [vmem:[#allocation4 + $0x1e0] sm:$0xff]
    %v525 = vld [vmem:[#allocation4 + $0x1e8] sm:$0xff]
    %v526 = vld [vmem:[#allocation4 + $0x1f0] sm:$0xff]
    %v527 = vld [vmem:[#allocation4 + $0x1f8] sm:$0xff]
    %v528 = vld [vmem:[%s4] sm:$0x3]
    %v530 = vperm.slane %v528, 0
    %v531 = vperm.slane %v528, 1
    %v598 = vunpack.c.l.b16 %v464
    %v599 = vunpack.c.h.b16 %v464
    %v600 = vunpack.c.l.b16 %v465
    %v601 = vunpack.c.h.b16 %v465
    %v602 = vunpack.c.l.b16 %v466
    %v603 = vunpack.c.h.b16 %v466
    %v604 = vunpack.c.l.b16 %v467
    %v605 = vunpack.c.h.b16 %v467
    %v606 = vunpack.c.l.b16 %v468
    %v607 = vunpack.c.h.b16 %v468
    %v608 = vunpack.c.l.b16 %v469
    %v609 = vunpack.c.h.b16 %v469
    %v610 = vunpack.c.l.b16 %v470
    %v611 = vunpack.c.h.b16 %v470
    %v612 = vunpack.c.l.b16 %v471
    %v613 = vunpack.c.h.b16 %v471
    %v614 = vunpack.c.l.b16 %v472
    %v615 = vunpack.c.h.b16 %v472
    %v616 = vunpack.c.l.b16 %v473
    %v617 = vunpack.c.h.b16 %v473
    %v618 = vunpack.c.l.b16 %v474
    %v619 = vunpack.c.h.b16 %v474
    %v620 = vunpack.c.l.b16 %v475
    %v621 = vunpack.c.h.b16 %v475
    %v622 = vunpack.c.l.b16 %v476
    %v623 = vunpack.c.h.b16 %v476
    %v624 = vunpack.c.l.b16 %v477
    %v625 = vunpack.c.h.b16 %v477
    %v626 = vunpack.c.l.b16 %v478
    %v627 = vunpack.c.h.b16 %v478
    %v628 = vunpack.c.l.b16 %v479
    %v629 = vunpack.c.h.b16 %v479
    %v630 = vunpack.c.l.b16 %v480
    %v631 = vunpack.c.h.b16 %v480
    %v632 = vunpack.c.l.b16 %v481
    %v633 = vunpack.c.h.b16 %v481
    %v634 = vunpack.c.l.b16 %v482
    %v635 = vunpack.c.h.b16 %v482
    %v636 = vunpack.c.l.b16 %v483
    %v637 = vunpack.c.h.b16 %v483
    %v638 = vunpack.c.l.b16 %v484
    %v639 = vunpack.c.h.b16 %v484
    %v640 = vunpack.c.l.b16 %v485
    %v641 = vunpack.c.h.b16 %v485
    %v642 = vunpack.c.l.b16 %v486
    %v643 = vunpack.c.h.b16 %v486
    %v644 = vunpack.c.l.b16 %v487
    %v645 = vunpack.c.h.b16 %v487
    %v646 = vunpack.c.l.b16 %v488
    %v647 = vunpack.c.h.b16 %v488
    %v648 = vunpack.c.l.b16 %v489
    %v649 = vunpack.c.h.b16 %v489
    %v650 = vunpack.c.l.b16 %v490
    %v651 = vunpack.c.h.b16 %v490
    %v652 = vunpack.c.l.b16 %v491
    %v653 = vunpack.c.h.b16 %v491
    %v654 = vunpack.c.l.b16 %v492
    %v655 = vunpack.c.h.b16 %v492
    %v656 = vunpack.c.l.b16 %v493
    %v657 = vunpack.c.h.b16 %v493
    %v658 = vunpack.c.l.b16 %v494
    %v659 = vunpack.c.h.b16 %v494
    %v660 = vunpack.c.l.b16 %v495
    %v661 = vunpack.c.h.b16 %v495
    %v662 = vunpack.c.l.b16 %v496
    %v663 = vunpack.c.h.b16 %v496
    %v664 = vunpack.c.l.b16 %v497
    %v665 = vunpack.c.h.b16 %v497
    %v666 = vunpack.c.l.b16 %v498
    %v667 = vunpack.c.h.b16 %v498
    %v668 = vunpack.c.l.b16 %v499
    %v669 = vunpack.c.h.b16 %v499
    %v670 = vunpack.c.l.b16 %v500
    %v671 = vunpack.c.h.b16 %v500
    %v672 = vunpack.c.l.b16 %v501
    %v673 = vunpack.c.h.b16 %v501
    %v674 = vunpack.c.l.b16 %v502
    %v675 = vunpack.c.h.b16 %v502
    %v676 = vunpack.c.l.b16 %v503
    %v677 = vunpack.c.h.b16 %v503
    %v678 = vunpack.c.l.b16 %v504
    %v679 = vunpack.c.h.b16 %v504
    %v680 = vunpack.c.l.b16 %v505
    %v681 = vunpack.c.h.b16 %v505
    %v682 = vunpack.c.l.b16 %v506
    %v683 = vunpack.c.h.b16 %v506
    %v684 = vunpack.c.l.b16 %v507
    %v685 = vunpack.c.h.b16 %v507
    %v686 = vunpack.c.l.b16 %v508
    %v687 = vunpack.c.h.b16 %v508
    %v688 = vunpack.c.l.b16 %v509
    %v689 = vunpack.c.h.b16 %v509
    %v690 = vunpack.c.l.b16 %v510
    %v691 = vunpack.c.h.b16 %v510
    %v692 = vunpack.c.l.b16 %v511
    %v693 = vunpack.c.h.b16 %v511
    %v694 = vunpack.c.l.b16 %v512
    %v695 = vunpack.c.h.b16 %v512
    %v696 = vunpack.c.l.b16 %v513
    %v697 = vunpack.c.h.b16 %v513
    %v698 = vunpack.c.l.b16 %v514
    %v699 = vunpack.c.h.b16 %v514
    %v700 = vunpack.c.l.b16 %v515
    %v701 = vunpack.c.h.b16 %v515
    %v702 = vunpack.c.l.b16 %v516
    %v703 = vunpack.c.h.b16 %v516
    %v704 = vunpack.c.l.b16 %v517
    %v705 = vunpack.c.h.b16 %v517
    %v706 = vunpack.c.l.b16 %v518
    %v707 = vunpack.c.h.b16 %v518
    %v708 = vunpack.c.l.b16 %v519
    %v709 = vunpack.c.h.b16 %v519
    %v710 = vunpack.c.l.b16 %v520
    %v711 = vunpack.c.h.b16 %v520
    %v712 = vunpack.c.l.b16 %v521
    %v713 = vunpack.c.h.b16 %v521
    %v714 = vunpack.c.l.b16 %v522
    %v715 = vunpack.c.h.b16 %v522
    %v716 = vunpack.c.l.b16 %v523
    %v717 = vunpack.c.h.b16 %v523
    %v718 = vunpack.c.l.b16 %v524
    %v719 = vunpack.c.h.b16 %v524
    %v720 = vunpack.c.l.b16 %v525
    %v721 = vunpack.c.h.b16 %v525
    %v722 = vunpack.c.l.b16 %v526
    %v723 = vunpack.c.h.b16 %v526
    %v724 = vunpack.c.l.b16 %v527
    %v725 = vunpack.c.h.b16 %v527
    %v726 = vpack.c.b16 %v600, %v598
    %v727 = vpack.c.b16 %v601, %v599
    %v728 = vpack.c.b16 %v604, %v602
    %v729 = vpack.c.b16 %v605, %v603
    %v730 = vpack.c.b16 %v608, %v606
    %v731 = vpack.c.b16 %v609, %v607
    %v732 = vpack.c.b16 %v612, %v610
    %v733 = vpack.c.b16 %v613, %v611
    %v734 = vpack.c.b16 %v616, %v614
    %v735 = vpack.c.b16 %v617, %v615
    %v736 = vpack.c.b16 %v620, %v618
    %v737 = vpack.c.b16 %v621, %v619
    %v738 = vpack.c.b16 %v624, %v622
    %v739 = vpack.c.b16 %v625, %v623
    %v740 = vpack.c.b16 %v628, %v626
    %v741 = vpack.c.b16 %v629, %v627
    %v742 = vpack.c.b16 %v632, %v630
    %v743 = vpack.c.b16 %v633, %v631
    %v744 = vpack.c.b16 %v636, %v634
    %v745 = vpack.c.b16 %v637, %v635
    %v746 = vpack.c.b16 %v640, %v638
    %v747 = vpack.c.b16 %v641, %v639
    %v748 = vpack.c.b16 %v644, %v642
    %v749 = vpack.c.b16 %v645, %v643
    %v750 = vpack.c.b16 %v648, %v646
    %v751 = vpack.c.b16 %v649, %v647
    %v752 = vpack.c.b16 %v652, %v650
    %v753 = vpack.c.b16 %v653, %v651
    %v754 = vpack.c.b16 %v656, %v654
    %v755 = vpack.c.b16 %v657, %v655
    %v756 = vpack.c.b16 %v660, %v658
    %v757 = vpack.c.b16 %v661, %v659
    %v758 = vpack.c.b16 %v664, %v662
    %v759 = vpack.c.b16 %v665, %v663
    %v760 = vpack.c.b16 %v668, %v666
    %v761 = vpack.c.b16 %v669, %v667
    %v762 = vpack.c.b16 %v672, %v670
    %v763 = vpack.c.b16 %v673, %v671
    %v764 = vpack.c.b16 %v676, %v674
    %v765 = vpack.c.b16 %v677, %v675
    %v766 = vpack.c.b16 %v680, %v678
    %v767 = vpack.c.b16 %v681, %v679
    %v768 = vpack.c.b16 %v684, %v682
    %v769 = vpack.c.b16 %v685, %v683
    %v770 = vpack.c.b16 %v688, %v686
    %v771 = vpack.c.b16 %v689, %v687
    %v772 = vpack.c.b16 %v692, %v690
    %v773 = vpack.c.b16 %v693, %v691
    %v774 = vpack.c.b16 %v696, %v694
    %v775 = vpack.c.b16 %v697, %v695
    %v776 = vpack.c.b16 %v700, %v698
    %v777 = vpack.c.b16 %v701, %v699
    %v778 = vpack.c.b16 %v704, %v702
    %v779 = vpack.c.b16 %v705, %v703
    %v780 = vpack.c.b16 %v708, %v706
    %v781 = vpack.c.b16 %v709, %v707
    %v782 = vpack.c.b16 %v712, %v710
    %v783 = vpack.c.b16 %v713, %v711
    %v784 = vpack.c.b16 %v716, %v714
    %v785 = vpack.c.b16 %v717, %v715
    %v786 = vpack.c.b16 %v720, %v718
    %v787 = vpack.c.b16 %v721, %v719
    %v788 = vpack.c.b16 %v724, %v722
    %v789 = vpack.c.b16 %v725, %v723
    %854 = vmatpush.bf16.msra.mxu0 %v740
    %855 = vmatpush.bf16.msra.mxu0 %v738
    %856 = vmatpush.bf16.msra.mxu0 %v736
    %857 = vmatpush.bf16.msra.mxu0 %v734
    %858 = vmatpush.bf16.msra.mxu0 %v732
    %859 = vmatpush.bf16.msra.mxu0 %v730
    %860 = vmatpush.bf16.msra.mxu0 %v728
    %861 = vmatpush.bf16.msra.mxu0 %v726
    %862 = vmatmul.bf16.gmra.mxu0 %v460
    %v863 = vpop.f32.mrf.mxu0
    %v864 = vadd.f32 %v530, %v863
    %v865 = vpop.f32.mrf.mxu0
    %866 = vdwg.mxu0
    %867 = vmatpush.bf16.msra.mxu0 %v756
    %868 = vmatpush.bf16.msra.mxu0 %v754
    %869 = vmatpush.bf16.msra.mxu0 %v752
    %870 = vmatpush.bf16.msra.mxu0 %v750
    %871 = vmatpush.bf16.msra.mxu0 %v748
    %872 = vmatpush.bf16.msra.mxu0 %v746
    %873 = vmatpush.bf16.msra.mxu0 %v744
    %874 = vmatpush.bf16.msra.mxu0 %v742
    %875 = vmatmul.bf16.gmra.mxu0 %v461
    %v876 = vpop.f32.mrf.mxu0
    %v877 = vadd.f32 %v864, %v876
    %v878 = vpop.f32.mrf.mxu0
    %879 = vdwg.mxu0
    %880 = vmatpush.bf16.msra.mxu0 %v772
    %881 = vmatpush.bf16.msra.mxu0 %v770
    %882 = vmatpush.bf16.msra.mxu0 %v768
    %883 = vmatpush.bf16.msra.mxu0 %v766
    %884 = vmatpush.bf16.msra.mxu0 %v764
    %885 = vmatpush.bf16.msra.mxu0 %v762
    %886 = vmatpush.bf16.msra.mxu0 %v760
    %887 = vmatpush.bf16.msra.mxu0 %v758
    %888 = vmatmul.bf16.gmra.mxu0 %v462
    %v889 = vpop.f32.mrf.mxu0
    %v890 = vadd.f32 %v877, %v889
    %v891 = vpop.f32.mrf.mxu0
    %892 = vdwg.mxu0
    %893 = vmatpush.bf16.msra.mxu0 %v788
    %894 = vmatpush.bf16.msra.mxu0 %v786
    %895 = vmatpush.bf16.msra.mxu0 %v784
    %896 = vmatpush.bf16.msra.mxu0 %v782
    %897 = vmatpush.bf16.msra.mxu0 %v780
    %898 = vmatpush.bf16.msra.mxu0 %v778
    %899 = vmatpush.bf16.msra.mxu0 %v776
    %900 = vmatpush.bf16.msra.mxu0 %v774
    %901 = vmatmul.bf16.gmra.mxu0 %v463
    %v902 = vpop.f32.mrf.mxu0
    %v903 = vadd.f32 %v890, %v902
    %v904 = vpop.f32.mrf.mxu0
    %905 = vdwg.mxu0
    %906 = vmatpush.bf16.msra.mxu0 %v741
    %907 = vmatpush.bf16.msra.mxu0 %v739
    %908 = vmatpush.bf16.msra.mxu0 %v737
    %909 = vmatpush.bf16.msra.mxu0 %v735
    %910 = vmatpush.bf16.msra.mxu0 %v733
    %911 = vmatpush.bf16.msra.mxu0 %v731
    %912 = vmatpush.bf16.msra.mxu0 %v729
    %913 = vmatpush.bf16.msra.mxu0 %v727
    %914 = vmatmul.bf16.gmra.mxu0 %v460
    %v915 = vpop.f32.mrf.mxu0
    %v916 = vadd.f32 %v531, %v915
    %v917 = vpop.f32.mrf.mxu0
    %918 = vdwg.mxu0
    %919 = vmatpush.bf16.msra.mxu0 %v757
    %920 = vmatpush.bf16.msra.mxu0 %v755
    %921 = vmatpush.bf16.msra.mxu0 %v753
    %922 = vmatpush.bf16.msra.mxu0 %v751
    %923 = vmatpush.bf16.msra.mxu0 %v749
    %924 = vmatpush.bf16.msra.mxu0 %v747
    %925 = vmatpush.bf16.msra.mxu0 %v745
    %926 = vmatpush.bf16.msra.mxu0 %v743
    %927 = vmatmul.bf16.gmra.mxu0 %v461
    %v928 = vpop.f32.mrf.mxu0
    %v929 = vadd.f32 %v916, %v928
    %v930 = vpop.f32.mrf.mxu0
    %931 = vdwg.mxu0
    %932 = vmatpush.bf16.msra.mxu0 %v773
    %933 = vmatpush.bf16.msra.mxu0 %v771
    %934 = vmatpush.bf16.msra.mxu0 %v769
    %935 = vmatpush.bf16.msra.mxu0 %v767
    %936 = vmatpush.bf16.msra.mxu0 %v765
    %937 = vmatpush.bf16.msra.mxu0 %v763
    %938 = vmatpush.bf16.msra.mxu0 %v761
    %939 = vmatpush.bf16.msra.mxu0 %v759
    %940 = vmatmul.bf16.gmra.mxu0 %v462
    %v941 = vpop.f32.mrf.mxu0
    %v942 = vadd.f32 %v929, %v941
    %v943 = vpop.f32.mrf.mxu0
    %944 = vdwg.mxu0
    %945 = vmatpush.bf16.msra.mxu0 %v789
    %946 = vmatpush.bf16.msra.mxu0 %v787
    %947 = vmatpush.bf16.msra.mxu0 %v785
    %948 = vmatpush.bf16.msra.mxu0 %v783
    %949 = vmatpush.bf16.msra.mxu0 %v781
    %950 = vmatpush.bf16.msra.mxu0 %v779
    %951 = vmatpush.bf16.msra.mxu0 %v777
    %952 = vmatpush.bf16.msra.mxu0 %v775
    %953 = vmatmul.bf16.gmra.mxu0 %v463
    %v954 = vpop.f32.mrf.mxu0
    %v955 = vadd.f32 %v942, %v954
    %v956 = vpop.f32.mrf.mxu0
    %957 = vdwg.mxu0
    %vm958 = vcmp.gt.f32.partialorder %v903, 0.0
    %vm959 = vcmp.gt.f32.partialorder %v955, 0.0
    %v960 = vmin.f32 %v903, 0.0
    %v961 = vmin.f32 %v955, 0.0
    %v962 = vmul.f32 %v960, 1.442695
    %v963 = vpow.pop %v962
    %v964 = vmul.f32 %v961, 1.442695
    %v965 = vpow.pop %v964
    %v966 = vsub.f32 %v963, 1.0
    %v967 = vsub.f32 %v965, 1.0
    %v968 = vsel %vm958, %v903, %v966
    %v969 = vsel %vm959, %v955, %v967
    %v970 = vpack.c.bf16 %v968, %v968
    %v971 = vpack.c.bf16 %v969, %v969
    %v972 = vld [vmem:[#allocation6] sm:$0xf]
    %v973 = vld [vmem:[#allocation6 + $0x4] sm:$0xf]
    %v974 = vld [vmem:[#allocation6 + $0x8] sm:$0xf]
    %v975 = vld [vmem:[#allocation6 + $0xc] sm:$0xf]
    %v976 = vld [vmem:[#allocation6 + $0x10] sm:$0xf]
    %v977 = vld [vmem:[#allocation6 + $0x14] sm:$0xf]
    %v978 = vld [vmem:[#allocation6 + $0x18] sm:$0xf]
    %v979 = vld [vmem:[#allocation6 + $0x1c] sm:$0xf]
    %v980 = vld [vmem:[#allocation6 + $0x20] sm:$0xf]
    %v981 = vld [vmem:[#allocation6 + $0x24] sm:$0xf]
    %v982 = vld [vmem:[#allocation6 + $0x28] sm:$0xf]
    %v983 = vld [vmem:[#allocation6 + $0x2c] sm:$0xf]
    %v984 = vld [vmem:[#allocation6 + $0x30] sm:$0xf]
    %v985 = vld [vmem:[#allocation6 + $0x34] sm:$0xf]
    %v986 = vld [vmem:[#allocation6 + $0x38] sm:$0xf]
    %v987 = vld [vmem:[#allocation6 + $0x3c] sm:$0xf]
    %v988 = vld [vmem:[#allocation6 + $0x40] sm:$0xf]
    %v989 = vld [vmem:[#allocation6 + $0x44] sm:$0xf]
    %v990 = vld [vmem:[#allocation6 + $0x48] sm:$0xf]
    %v991 = vld [vmem:[#allocation6 + $0x4c] sm:$0xf]
    %v992 = vld [vmem:[#allocation6 + $0x50] sm:$0xf]
    %v993 = vld [vmem:[#allocation6 + $0x54] sm:$0xf]
    %v994 = vld [vmem:[#allocation6 + $0x58] sm:$0xf]
    %v995 = vld [vmem:[#allocation6 + $0x5c] sm:$0xf]
    %v996 = vld [vmem:[#allocation6 + $0x60] sm:$0xf]
    %v997 = vld [vmem:[#allocation6 + $0x64] sm:$0xf]
    %v998 = vld [vmem:[#allocation6 + $0x68] sm:$0xf]
    %v999 = vld [vmem:[#allocation6 + $0x6c] sm:$0xf]
    %v1000 = vld [vmem:[#allocation6 + $0x70] sm:$0xf]
    %v1001 = vld [vmem:[#allocation6 + $0x74] sm:$0xf]
    %v1002 = vld [vmem:[#allocation6 + $0x78] sm:$0xf]
    %v1003 = vld [vmem:[#allocation6 + $0x7c] sm:$0xf]
    %v1004 = vld [vmem:[%s6] sm:$0x1]
    %v1006 = vperm.slane %v1004, 0
    %v1040 = vunpack.c.l.b16 %v972
    %v1041 = vunpack.c.l.b16 %v973
    %v1042 = vunpack.c.l.b16 %v974
    %v1043 = vunpack.c.l.b16 %v975
    %v1044 = vunpack.c.l.b16 %v976
    %v1045 = vunpack.c.l.b16 %v977
    %v1046 = vunpack.c.l.b16 %v978
    %v1047 = vunpack.c.l.b16 %v979
    %v1048 = vunpack.c.l.b16 %v980
    %v1049 = vunpack.c.l.b16 %v981
    %v1050 = vunpack.c.l.b16 %v982
    %v1051 = vunpack.c.l.b16 %v983
    %v1052 = vunpack.c.l.b16 %v984
    %v1053 = vunpack.c.l.b16 %v985
    %v1054 = vunpack.c.l.b16 %v986
    %v1055 = vunpack.c.l.b16 %v987
    %v1056 = vunpack.c.l.b16 %v988
    %v1057 = vunpack.c.l.b16 %v989
    %v1058 = vunpack.c.l.b16 %v990
    %v1059 = vunpack.c.l.b16 %v991
    %v1060 = vunpack.c.l.b16 %v992
    %v1061 = vunpack.c.l.b16 %v993
    %v1062 = vunpack.c.l.b16 %v994
    %v1063 = vunpack.c.l.b16 %v995
    %v1064 = vunpack.c.l.b16 %v996
    %v1065 = vunpack.c.l.b16 %v997
    %v1066 = vunpack.c.l.b16 %v998
    %v1067 = vunpack.c.l.b16 %v999
    %v1068 = vunpack.c.l.b16 %v1000
    %v1069 = vunpack.c.l.b16 %v1001
    %v1070 = vunpack.c.l.b16 %v1002
    %v1071 = vunpack.c.l.b16 %v1003
    %v1072 = vpack.c.b16 %v1041, %v1040
    %v1073 = vpack.c.b16 %v1043, %v1042
    %v1074 = vpack.c.b16 %v1045, %v1044
    %v1075 = vpack.c.b16 %v1047, %v1046
    %v1076 = vpack.c.b16 %v1049, %v1048
    %v1077 = vpack.c.b16 %v1051, %v1050
    %v1078 = vpack.c.b16 %v1053, %v1052
    %v1079 = vpack.c.b16 %v1055, %v1054
    %v1080 = vpack.c.b16 %v1057, %v1056
    %v1081 = vpack.c.b16 %v1059, %v1058
    %v1082 = vpack.c.b16 %v1061, %v1060
    %v1083 = vpack.c.b16 %v1063, %v1062
    %v1084 = vpack.c.b16 %v1065, %v1064
    %v1085 = vpack.c.b16 %v1067, %v1066
    %v1086 = vpack.c.b16 %v1069, %v1068
    %v1087 = vpack.c.b16 %v1071, %v1070
    %1104 = vmatpush.bf16.msra.mxu0 %v1079
    %1105 = vmatpush.bf16.msra.mxu0 %v1078
    %1106 = vmatpush.bf16.msra.mxu0 %v1077
    %1107 = vmatpush.bf16.msra.mxu0 %v1076
    %1108 = vmatpush.bf16.msra.mxu0 %v1075
    %1109 = vmatpush.bf16.msra.mxu0 %v1074
    %1110 = vmatpush.bf16.msra.mxu0 %v1073
    %1111 = vmatpush.bf16.msra.mxu0 %v1072
    %1112 = vmatmul.bf16.gmra.mxu0 %v970
    %v1113 = vpop.f32.mrf.mxu0
    %v1114 = vadd.f32 %v1006, %v1113
    %v1115 = vpop.f32.mrf.mxu0
    %1116 = vdwg.mxu0
    %1117 = vmatpush.bf16.msra.mxu0 %v1087
    %1118 = vmatpush.bf16.msra.mxu0 %v1086
    %1119 = vmatpush.bf16.msra.mxu0 %v1085
    %1120 = vmatpush.bf16.msra.mxu0 %v1084
    %1121 = vmatpush.bf16.msra.mxu0 %v1083
    %1122 = vmatpush.bf16.msra.mxu0 %v1082
    %1123 = vmatpush.bf16.msra.mxu0 %v1081
    %1124 = vmatpush.bf16.msra.mxu0 %v1080
    %1125 = vmatmul.bf16.gmra.mxu0 %v971
    %v1126 = vpop.f32.mrf.mxu0
    %v1127 = vadd.f32 %v1114, %v1126
    %v1128 = vpop.f32.mrf.mxu0
    %1129 = vdwg.mxu0
    %v1130 = vlaneseq
    %v1131 = vand.u32 %v1130, 127
    %vm1132 = vcmp.lt.s32.totalorder %v1131, 2
    %v1133 = vsel %vm1132, %v1127, -inf
    %1134 = vmax.xlane.f32.xlu0 %v1133
    %v1135 = vpop.xlane.xlu0 %1134
    %v1136 = vsub.f32 %v1127, %v1135
    %v1137 = vmul.f32 %v1136, 1.442695
    %v1138 = vpow.pop %v1137
    %v1139 = vsel %vm1132, %v1138, 0.0
    %1140 = vadd.xlane.f32.xlu0 %v1139
    %v1141 = vpop.xlane.xlu0 %1140
    %v1142 = vrcp.pop %v1141
    %v1143 = vmul.f32 %v1139, %v1142
    %1144 = vst [vmem:[%s7] sm:$0xff] %v1127
    %1145 = vst [vmem:[%s7 + $0x8] sm:$0xff] %v1143
    // Predicated region
    $region42: #{eegnet_forward.1} parent=1 // pred_check
      _
    $region43: #{eegnet_forward.1} parent=1 // pred_check_branch
      %1147 = sbr.rel (0) target = $region45
    $region44: #{eegnet_forward.1} parent=1 // pred_region
      _
    $region45: #{eegnet_forward.1} parent=1 // pred_fallthru
      _
    // Predicated region
    $region46: #{eegnet_forward.1} parent=1 // pred_check
      _
    $region47: #{eegnet_forward.1} parent=1 // pred_check_branch
      %1149 = sbr.rel (0) target = $region49
    $region48: #{eegnet_forward.1} parent=1 // pred_region
      _
    $region49: #{eegnet_forward.1} parent=1 // pred_fallthru
      _
    %1150 = vsyncpa [#allocation3], 1
    %1151 = vsyncpa [#allocation5], 1

</llo_original>
